<compile_context>
chip_gen: v7x
topology: tpu7x:2x2x1
jax: 0.10.0
libtpu: 0.0.40
codegen_flags: <defaults>
</compile_context>

<pallas_src>
import jax
import jax.numpy as jnp
from jax import lax
from jax.experimental import pallas as pl
from jax.experimental.pallas import tpu as pltpu


def _round_up(n, m):
    return ((n + m - 1) // m) * m


def _custom_res_scan_kernel(x_ref, w1_ref, bh_ref, w2t_ref, h_new_ref, carry_ref):
    """Serial recurrence over one T-chunk.

    Per step:  u_t   = x_t * w1 + b_h        (VPU, hidden under MXU)
               h_new = carry @ W2^T + u_t    (one MXU pass)
               carry = carry + h_new         (residual)
    h_new is written straight to the output block; the carry persists across
    grid steps in a VMEM scratch.
    """
    Tt, Bp, Hp = h_new_ref.shape

    @pl.when(pl.program_id(0) == 0)
    def _():
        carry_ref[...] = jnp.zeros_like(carry_ref)

    w2t = w2t_ref[...]                                     # (Hp, Hp), held in vregs
    # Hoist the (1,H)->(B,H) broadcasts out of the serial loop (no CSE inside loops).
    w1b = jnp.broadcast_to(w1_ref[...], (Bp, Hp))
    bhb = jnp.broadcast_to(bh_ref[...], (Bp, Hp))

    def body(t, carry):
        u = x_ref[t] * w1b + bhb                           # (Bp,1) * (Bp,Hp) + (Bp,Hp)
        h_new = jnp.dot(carry, w2t,
                        preferred_element_type=jnp.float32,
                        precision=lax.Precision.DEFAULT) + u
        # TODO(synk): apply f_hidden here if the module is configured with one
        #             (the residual structure already stores h_new explicitly).
        h_new_ref[t] = h_new                               # lane-dense (Bp,Hp) store
        return carry + h_new                               # residual carry

    carry_ref[...] = lax.fori_loop(0, Tt, body, carry_ref[...], unroll=8)


@jax.jit
def custom_res_forward(x, W1, W2, W3, b_h):
    """x: (B, T) float32 (input_size == 1). Returns ys: (B, T, O)."""
    B, T = x.shape
    H = W2.shape[0]
    assert W1.shape[1] == 1, "PyTorch forward requires input_size == 1 (xi.t() on 2-D x)"

    f32 = jnp.float32
    Bp = _round_up(B, 8)                  # sublane-dense batch
    Hp = _round_up(H, 128)                # lane-dense hidden
    # T-chunk: large enough to amortize per-step grid overhead (~0.35 us), small
    # enough that the double-buffered (Tt,Bp,Hp) output blocks fit v7x's 64 MiB VMEM.
    Tt = min(T, 512)
    Tp = _round_up(T, Tt)

    # Zero-padded, layout-friendly kernel inputs (padding is exact: zero rows/cols).
    x_p = jnp.zeros((Tp, Bp, 1), f32).at[:T, :B, 0].set(x.T.astype(f32))
    w1_p = jnp.zeros((1, Hp), f32).at[0, :H].set(W1[:, 0].astype(f32))
    bh_p = jnp.zeros((1, Hp), f32).at[0, :H].set(b_h.astype(f32))
    w2t_p = jnp.zeros((Hp, Hp), f32).at[:H, :H].set(W2.T.astype(f32))
    # TODO(synk): at larger H, cast w2t_p (and the streamed carry) to bfloat16 for a
    #             single MXU pass per step; kept f32 here to preserve the 1e-5 check.
    # TODO(synk): for many independent sequences, add a leading "parallel" grid axis
    #             over batch chunks (2 TCs on v7x) and/or interleave k independent
    #             recurrences per step to hide MXU result-drain latency.

    h_new = pl.pallas_call(
        _custom_res_scan_kernel,
        out_shape=jax.ShapeDtypeStruct((Tp, Bp, Hp), f32),
        grid=(Tp // Tt,),
        in_specs=[
            pl.BlockSpec((Tt, Bp, 1), lambda i: (i, 0, 0)),    # x chunk
            pl.BlockSpec((1, Hp), lambda i: (0, 0)),           # w1 (row)
            pl.BlockSpec((1, Hp), lambda i: (0, 0)),           # b_h (row)
            pl.BlockSpec((Hp, Hp), lambda i: (0, 0)),          # W2^T (padded)
        ],
        out_specs=pl.BlockSpec((Tt, Bp, Hp), lambda i: (i, 0, 0)),
        scratch_shapes=[pltpu.VMEM((Bp, Hp), f32)],            # recurrent carry
        compiler_params=pltpu.CompilerParams(
            dimension_semantics=("arbitrary",),                # sequential scan over T-chunks
            vmem_limit_bytes=32 * 1024 * 1024,                 # safe on v5e/v6e/v7x
        ),
    )(x_p, w1_p, bh_p, w2t_p)                                  # (Tp, Bp, Hp)

    # Strip padding; project with W3 off the serial chain as one batched matmul.
    h_new = h_new[:T, :B, :H]
    ys_tbo = jnp.einsum("tbh,oh->tbo", h_new, W3.astype(f32))  # (T, B, O)
    return jnp.transpose(ys_tbo, (1, 0, 2))                    # (B, T, O)


def _reference_forward(x, W1, W2, W3, b_h):
    """Pure-JAX replica of the PyTorch forward for verification."""
    B, T = x.shape
    H = W2.shape[0]
    h = jnp.zeros((B, H), jnp.float32)
    ys = []
    for t in range(T):
        hprev = h
        x_t = x[:, t:t + 1]                                 # (B, 1)
        h = x_t @ W1.T + h @ W2.T + b_h                     # (B, H)
        ys.append(h @ W3.T)                                 # (B, O)
        h = h + hprev
    return jnp.stack(ys, axis=1)                            # (B, T, O)


if __name__ == "__main__":
    # Module hyperparameters (input_size must be 1 for the PyTorch forward to run).
    input_size = 1
    hidden_size = 32
    output_size = 4
    W_scale = 0.1

    batch = 2
    seq = 8

    key = jax.random.PRNGKey(0)
    k1, k2, k3, kx = jax.random.split(key, 4)

    # Deterministic parameter init mirroring (rand(...) - 0.5) * W_scale.
    W1 = (jax.random.uniform(k1, (hidden_size, input_size), jnp.float32) - 0.5) * W_scale
    W2 = (jax.random.uniform(k2, (hidden_size, hidden_size), jnp.float32) - 0.5) * W_scale
    W3 = (jax.random.uniform(k3, (output_size, hidden_size), jnp.float32) - 0.5) * W_scale
    b_h = jnp.zeros((hidden_size,), jnp.float32)

    x = jax.random.normal(kx, (batch, seq), jnp.float32)

    ys = custom_res_forward(x, W1, W2, W3, b_h)
    ys = jax.block_until_ready(ys)

    ys_ref = _reference_forward(x, W1, W2, W3, b_h)
    assert ys.shape == (batch, seq, output_size)
    assert jnp.allclose(ys, ys_ref, atol=1e-5, rtol=1e-5), \
        float(jnp.max(jnp.abs(ys - ys_ref)))

    print("KERNEL_OK")
</pallas_src>

<mosaic_0001>
module attributes {stable_mosaic.version = 11 : i64} {
  func.func @_custom_res_scan_kernel(%arg0: i32, %arg1: memref<8x8x1xf32, #tpu.memory_space<vmem>>, %arg2: memref<1x128xf32, #tpu.memory_space<vmem>>, %arg3: memref<1x128xf32, #tpu.memory_space<vmem>>, %arg4: memref<128x128xf32, #tpu.memory_space<vmem>>, %arg5: memref<8x8x128xf32, #tpu.memory_space<vmem>>, %arg6: memref<8x128xf32, #tpu.memory_space<vmem>>) attributes {dimension_semantics = [#tpu.dimension_semantics<arbitrary>], iteration_bounds = array<i64: 1>, scalar_prefetch = 0 : i64, scratch_operands = 1 : i64, tpu.core_type = #tpu.core_type<tc>, window_params = [{transform_indices = @transform_0, window_bounds = array<i64: 8, 8, 1>}, {pipeline_mode = #tpu.pipeline_mode<synchronous>, transform_indices = @transform_1, window_bounds = array<i64: 1, 128>}, {pipeline_mode = #tpu.pipeline_mode<synchronous>, transform_indices = @transform_2, window_bounds = array<i64: 1, 128>}, {pipeline_mode = #tpu.pipeline_mode<synchronous>, transform_indices = @transform_3, window_bounds = array<i64: 128, 128>}, {transform_indices = @transform_4, window_bounds = array<i64: 8, 8, 128>}]} {
    %c0_i32 = arith.constant 0 : i32
    %0 = arith.cmpi eq, %arg0, %c0_i32 : i32
    %1 = arith.extui %0 : i1 to i32
    %c0_i32_0 = arith.constant 0 : i32
    %2 = arith.cmpi ne, %1, %c0_i32_0 : i32
    scf.if %2 {
      %cst_50 = arith.constant 0.000000e+00 : f32
      %116 = vector.broadcast %cst_50 : f32 to vector<8x128xf32>
      %c0_51 = arith.constant 0 : index
      %c0_52 = arith.constant 0 : index
      %117 = vector.load %arg6[%c0_51, %c0_52] : memref<8x128xf32, #tpu.memory_space<vmem>>, vector<8x128xf32>
      tpu.vector_store %arg6[%c0_51, %c0_52], %116 {strides = array<i32>} : memref<8x128xf32, #tpu.memory_space<vmem>>, vector<8x128xf32>,
    } else {
    }
    %c0 = arith.constant 0 : index
    %c0_1 = arith.constant 0 : index
    %3 = vector.load %arg4[%c0, %c0_1] : memref<128x128xf32, #tpu.memory_space<vmem>>, vector<128x128xf32>
    %c0_2 = arith.constant 0 : index
    %c0_3 = arith.constant 0 : index
    %4 = vector.load %arg2[%c0_2, %c0_3] : memref<1x128xf32, #tpu.memory_space<vmem>>, vector<1x128xf32>
    %5 = vector.shape_cast %4 : vector<1x128xf32> to vector<1x128xf32>
    %6 = vector.broadcast %5 : vector<1x128xf32> to vector<8x128xf32>
    %c0_4 = arith.constant 0 : index
    %c0_5 = arith.constant 0 : index
    %7 = vector.load %arg3[%c0_4, %c0_5] : memref<1x128xf32, #tpu.memory_space<vmem>>, vector<1x128xf32>
    %8 = vector.shape_cast %7 : vector<1x128xf32> to vector<1x128xf32>
    %9 = vector.broadcast %8 : vector<1x128xf32> to vector<8x128xf32>
    %c0_6 = arith.constant 0 : index
    %c0_7 = arith.constant 0 : index
    %10 = vector.load %arg6[%c0_6, %c0_7] : memref<8x128xf32, #tpu.memory_space<vmem>>, vector<8x128xf32>
    %c0_i32_8 = arith.constant 0 : i32
    %11 = arith.index_cast %c0_i32_8 : i32 to index
    %c0_9 = arith.constant 0 : index
    %c0_10 = arith.constant 0 : index
    %12 = vector.load %arg1[%11, %c0_9, %c0_10] : memref<8x8x1xf32, #tpu.memory_space<vmem>>, vector<1x8x1xf32>
    %13 = vector.shape_cast %12 : vector<1x8x1xf32> to vector<8x1xf32>
    %14 = vector.broadcast %13 : vector<8x1xf32> to vector<8x128xf32>
    %15 = arith.mulf %14, %6 : vector<8x128xf32>
    %16 = arith.addf %15, %9 : vector<8x128xf32>
    %cst = arith.constant dense<0.000000e+00> : vector<8x128xf32>
    %17 = tpu.matmul %10, %3, %cst {dimension_numbers = #tpu.dot_dimension_numbers<[1], [0], [0], [1], [0, 0, 1, 1], [], []>} : vector<8x128xf32>, vector<128x128xf32>, vector<8x128xf32> -> vector<8x128xf32>
    %18 = arith.addf %17, %16 : vector<8x128xf32>
    %19 = arith.index_cast %c0_i32_8 : i32 to index
    %c0_11 = arith.constant 0 : index
    %c0_12 = arith.constant 0 : index
    %20 = vector.load %arg5[%19, %c0_11, %c0_12] : memref<8x8x128xf32, #tpu.memory_space<vmem>>, vector<1x8x128xf32>
    %21 = vector.shape_cast %20 : vector<1x8x128xf32> to vector<8x128xf32>
    %22 = vector.shape_cast %18 : vector<8x128xf32> to vector<1x8x128xf32>
    tpu.vector_store %arg5[%19, %c0_11, %c0_12], %22 {strides = array<i32>} : memref<8x8x128xf32, #tpu.memory_space<vmem>>, vector<1x8x128xf32>,
    %23 = arith.addf %10, %18 : vector<8x128xf32>
    %c1_i32 = arith.constant 1 : i32
    %24 = arith.index_cast %c1_i32 : i32 to index
    %c0_13 = arith.constant 0 : index
    %c0_14 = arith.constant 0 : index
    %25 = vector.load %arg1[%24, %c0_13, %c0_14] : memref<8x8x1xf32, #tpu.memory_space<vmem>>, vector<1x8x1xf32>
    %26 = vector.shape_cast %25 : vector<1x8x1xf32> to vector<8x1xf32>
    %27 = vector.broadcast %26 : vector<8x1xf32> to vector<8x128xf32>
    %28 = arith.mulf %27, %6 : vector<8x128xf32>
    %29 = arith.addf %28, %9 : vector<8x128xf32>
    %cst_15 = arith.constant dense<0.000000e+00> : vector<8x128xf32>
    %30 = tpu.matmul %23, %3, %cst_15 {dimension_numbers = #tpu.dot_dimension_numbers<[1], [0], [0], [1], [0, 0, 1, 1], [], []>} : vector<8x128xf32>, vector<128x128xf32>, vector<8x128xf32> -> vector<8x128xf32>
    %31 = arith.addf %30, %29 : vector<8x128xf32>
    %32 = arith.index_cast %c1_i32 : i32 to index
    %c0_16 = arith.constant 0 : index
    %c0_17 = arith.constant 0 : index
    %33 = vector.load %arg5[%32, %c0_16, %c0_17] : memref<8x8x128xf32, #tpu.memory_space<vmem>>, vector<1x8x128xf32>
    %34 = vector.shape_cast %33 : vector<1x8x128xf32> to vector<8x128xf32>
    %35 = vector.shape_cast %31 : vector<8x128xf32> to vector<1x8x128xf32>
    tpu.vector_store %arg5[%32, %c0_16, %c0_17], %35 {strides = array<i32>} : memref<8x8x128xf32, #tpu.memory_space<vmem>>, vector<1x8x128xf32>,
    %36 = arith.addf %23, %31 : vector<8x128xf32>
    %c2_i32 = arith.constant 2 : i32
    %37 = arith.index_cast %c2_i32 : i32 to index
    %c0_18 = arith.constant 0 : index
    %c0_19 = arith.constant 0 : index
    %38 = vector.load %arg1[%37, %c0_18, %c0_19] : memref<8x8x1xf32, #tpu.memory_space<vmem>>, vector<1x8x1xf32>
    %39 = vector.shape_cast %38 : vector<1x8x1xf32> to vector<8x1xf32>
    %40 = vector.broadcast %39 : vector<8x1xf32> to vector<8x128xf32>
    %41 = arith.mulf %40, %6 : vector<8x128xf32>
    %42 = arith.addf %41, %9 : vector<8x128xf32>
    %cst_20 = arith.constant dense<0.000000e+00> : vector<8x128xf32>
    %43 = tpu.matmul %36, %3, %cst_20 {dimension_numbers = #tpu.dot_dimension_numbers<[1], [0], [0], [1], [0, 0, 1, 1], [], []>} : vector<8x128xf32>, vector<128x128xf32>, vector<8x128xf32> -> vector<8x128xf32>
    %44 = arith.addf %43, %42 : vector<8x128xf32>
    %45 = arith.index_cast %c2_i32 : i32 to index
    %c0_21 = arith.constant 0 : index
    %c0_22 = arith.constant 0 : index
    %46 = vector.load %arg5[%45, %c0_21, %c0_22] : memref<8x8x128xf32, #tpu.memory_space<vmem>>, vector<1x8x128xf32>
    %47 = vector.shape_cast %46 : vector<1x8x128xf32> to vector<8x128xf32>
    %48 = vector.shape_cast %44 : vector<8x128xf32> to vector<1x8x128xf32>
    tpu.vector_store %arg5[%45, %c0_21, %c0_22], %48 {strides = array<i32>} : memref<8x8x128xf32, #tpu.memory_space<vmem>>, vector<1x8x128xf32>,
    %49 = arith.addf %36, %44 : vector<8x128xf32>
    %c3_i32 = arith.constant 3 : i32
    %50 = arith.index_cast %c3_i32 : i32 to index
    %c0_23 = arith.constant 0 : index
    %c0_24 = arith.constant 0 : index
    %51 = vector.load %arg1[%50, %c0_23, %c0_24] : memref<8x8x1xf32, #tpu.memory_space<vmem>>, vector<1x8x1xf32>
    %52 = vector.shape_cast %51 : vector<1x8x1xf32> to vector<8x1xf32>
    %53 = vector.broadcast %52 : vector<8x1xf32> to vector<8x128xf32>
    %54 = arith.mulf %53, %6 : vector<8x128xf32>
    %55 = arith.addf %54, %9 : vector<8x128xf32>
    %cst_25 = arith.constant dense<0.000000e+00> : vector<8x128xf32>
    %56 = tpu.matmul %49, %3, %cst_25 {dimension_numbers = #tpu.dot_dimension_numbers<[1], [0], [0], [1], [0, 0, 1, 1], [], []>} : vector<8x128xf32>, vector<128x128xf32>, vector<8x128xf32> -> vector<8x128xf32>
    %57 = arith.addf %56, %55 : vector<8x128xf32>
    %58 = arith.index_cast %c3_i32 : i32 to index
    %c0_26 = arith.constant 0 : index
    %c0_27 = arith.constant 0 : index
    %59 = vector.load %arg5[%58, %c0_26, %c0_27] : memref<8x8x128xf32, #tpu.memory_space<vmem>>, vector<1x8x128xf32>
    %60 = vector.shape_cast %59 : vector<1x8x128xf32> to vector<8x128xf32>
    %61 = vector.shape_cast %57 : vector<8x128xf32> to vector<1x8x128xf32>
    tpu.vector_store %arg5[%58, %c0_26, %c0_27], %61 {strides = array<i32>} : memref<8x8x128xf32, #tpu.memory_space<vmem>>, vector<1x8x128xf32>,
    %62 = arith.addf %49, %57 : vector<8x128xf32>
    %c4_i32 = arith.constant 4 : i32
    %63 = arith.index_cast %c4_i32 : i32 to index
    %c0_28 = arith.constant 0 : index
    %c0_29 = arith.constant 0 : index
    %64 = vector.load %arg1[%63, %c0_28, %c0_29] : memref<8x8x1xf32, #tpu.memory_space<vmem>>, vector<1x8x1xf32>
    %65 = vector.shape_cast %64 : vector<1x8x1xf32> to vector<8x1xf32>
    %66 = vector.broadcast %65 : vector<8x1xf32> to vector<8x128xf32>
    %67 = arith.mulf %66, %6 : vector<8x128xf32>
    %68 = arith.addf %67, %9 : vector<8x128xf32>
    %cst_30 = arith.constant dense<0.000000e+00> : vector<8x128xf32>
    %69 = tpu.matmul %62, %3, %cst_30 {dimension_numbers = #tpu.dot_dimension_numbers<[1], [0], [0], [1], [0, 0, 1, 1], [], []>} : vector<8x128xf32>, vector<128x128xf32>, vector<8x128xf32> -> vector<8x128xf32>
    %70 = arith.addf %69, %68 : vector<8x128xf32>
    %71 = arith.index_cast %c4_i32 : i32 to index
    %c0_31 = arith.constant 0 : index
    %c0_32 = arith.constant 0 : index
    %72 = vector.load %arg5[%71, %c0_31, %c0_32] : memref<8x8x128xf32, #tpu.memory_space<vmem>>, vector<1x8x128xf32>
    %73 = vector.shape_cast %72 : vector<1x8x128xf32> to vector<8x128xf32>
    %74 = vector.shape_cast %70 : vector<8x128xf32> to vector<1x8x128xf32>
    tpu.vector_store %arg5[%71, %c0_31, %c0_32], %74 {strides = array<i32>} : memref<8x8x128xf32, #tpu.memory_space<vmem>>, vector<1x8x128xf32>,
    %75 = arith.addf %62, %70 : vector<8x128xf32>
    %c5_i32 = arith.constant 5 : i32
    %76 = arith.index_cast %c5_i32 : i32 to index
    %c0_33 = arith.constant 0 : index
    %c0_34 = arith.constant 0 : index
    %77 = vector.load %arg1[%76, %c0_33, %c0_34] : memref<8x8x1xf32, #tpu.memory_space<vmem>>, vector<1x8x1xf32>
    %78 = vector.shape_cast %77 : vector<1x8x1xf32> to vector<8x1xf32>
    %79 = vector.broadcast %78 : vector<8x1xf32> to vector<8x128xf32>
    %80 = arith.mulf %79, %6 : vector<8x128xf32>
    %81 = arith.addf %80, %9 : vector<8x128xf32>
    %cst_35 = arith.constant dense<0.000000e+00> : vector<8x128xf32>
    %82 = tpu.matmul %75, %3, %cst_35 {dimension_numbers = #tpu.dot_dimension_numbers<[1], [0], [0], [1], [0, 0, 1, 1], [], []>} : vector<8x128xf32>, vector<128x128xf32>, vector<8x128xf32> -> vector<8x128xf32>
    %83 = arith.addf %82, %81 : vector<8x128xf32>
    %84 = arith.index_cast %c5_i32 : i32 to index
    %c0_36 = arith.constant 0 : index
    %c0_37 = arith.constant 0 : index
    %85 = vector.load %arg5[%84, %c0_36, %c0_37] : memref<8x8x128xf32, #tpu.memory_space<vmem>>, vector<1x8x128xf32>
    %86 = vector.shape_cast %85 : vector<1x8x128xf32> to vector<8x128xf32>
    %87 = vector.shape_cast %83 : vector<8x128xf32> to vector<1x8x128xf32>
    tpu.vector_store %arg5[%84, %c0_36, %c0_37], %87 {strides = array<i32>} : memref<8x8x128xf32, #tpu.memory_space<vmem>>, vector<1x8x128xf32>,
    %88 = arith.addf %75, %83 : vector<8x128xf32>
    %c6_i32 = arith.constant 6 : i32
    %89 = arith.index_cast %c6_i32 : i32 to index
    %c0_38 = arith.constant 0 : index
    %c0_39 = arith.constant 0 : index
    %90 = vector.load %arg1[%89, %c0_38, %c0_39] : memref<8x8x1xf32, #tpu.memory_space<vmem>>, vector<1x8x1xf32>
    %91 = vector.shape_cast %90 : vector<1x8x1xf32> to vector<8x1xf32>
    %92 = vector.broadcast %91 : vector<8x1xf32> to vector<8x128xf32>
    %93 = arith.mulf %92, %6 : vector<8x128xf32>
    %94 = arith.addf %93, %9 : vector<8x128xf32>
    %cst_40 = arith.constant dense<0.000000e+00> : vector<8x128xf32>
    %95 = tpu.matmul %88, %3, %cst_40 {dimension_numbers = #tpu.dot_dimension_numbers<[1], [0], [0], [1], [0, 0, 1, 1], [], []>} : vector<8x128xf32>, vector<128x128xf32>, vector<8x128xf32> -> vector<8x128xf32>
    %96 = arith.addf %95, %94 : vector<8x128xf32>
    %97 = arith.index_cast %c6_i32 : i32 to index
    %c0_41 = arith.constant 0 : index
    %c0_42 = arith.constant 0 : index
    %98 = vector.load %arg5[%97, %c0_41, %c0_42] : memref<8x8x128xf32, #tpu.memory_space<vmem>>, vector<1x8x128xf32>
    %99 = vector.shape_cast %98 : vector<1x8x128xf32> to vector<8x128xf32>
    %100 = vector.shape_cast %96 : vector<8x128xf32> to vector<1x8x128xf32>
    tpu.vector_store %arg5[%97, %c0_41, %c0_42], %100 {strides = array<i32>} : memref<8x8x128xf32, #tpu.memory_space<vmem>>, vector<1x8x128xf32>,
    %101 = arith.addf %88, %96 : vector<8x128xf32>
    %c7_i32 = arith.constant 7 : i32
    %102 = arith.index_cast %c7_i32 : i32 to index
    %c0_43 = arith.constant 0 : index
    %c0_44 = arith.constant 0 : index
    %103 = vector.load %arg1[%102, %c0_43, %c0_44] : memref<8x8x1xf32, #tpu.memory_space<vmem>>, vector<1x8x1xf32>
    %104 = vector.shape_cast %103 : vector<1x8x1xf32> to vector<8x1xf32>
    %105 = vector.broadcast %104 : vector<8x1xf32> to vector<8x128xf32>
    %106 = arith.mulf %105, %6 : vector<8x128xf32>
    %107 = arith.addf %106, %9 : vector<8x128xf32>
    %cst_45 = arith.constant dense<0.000000e+00> : vector<8x128xf32>
    %108 = tpu.matmul %101, %3, %cst_45 {dimension_numbers = #tpu.dot_dimension_numbers<[1], [0], [0], [1], [0, 0, 1, 1], [], []>} : vector<8x128xf32>, vector<128x128xf32>, vector<8x128xf32> -> vector<8x128xf32>
    %109 = arith.addf %108, %107 : vector<8x128xf32>
    %110 = arith.index_cast %c7_i32 : i32 to index
    %c0_46 = arith.constant 0 : index
    %c0_47 = arith.constant 0 : index
    %111 = vector.load %arg5[%110, %c0_46, %c0_47] : memref<8x8x128xf32, #tpu.memory_space<vmem>>, vector<1x8x128xf32>
    %112 = vector.shape_cast %111 : vector<1x8x128xf32> to vector<8x128xf32>
    %113 = vector.shape_cast %109 : vector<8x128xf32> to vector<1x8x128xf32>
    tpu.vector_store %arg5[%110, %c0_46, %c0_47], %113 {strides = array<i32>} : memref<8x8x128xf32, #tpu.memory_space<vmem>>, vector<1x8x128xf32>,
    %114 = arith.addf %101, %109 : vector<8x128xf32>
    %c8_i32 = arith.constant 8 : i32
    %c0_48 = arith.constant 0 : index
    %c0_49 = arith.constant 0 : index
    %115 = vector.load %arg6[%c0_48, %c0_49] : memref<8x128xf32, #tpu.memory_space<vmem>>, vector<8x128xf32>
    tpu.vector_store %arg6[%c0_48, %c0_49], %114 {strides = array<i32>} : memref<8x128xf32, #tpu.memory_space<vmem>>, vector<8x128xf32>,
    return
  }
  func.func @transform_0(%arg0: i32) -> (i32, i32, i32) {
    %c0_i32 = arith.constant 0 : i32
    %c0_i32_0 = arith.constant 0 : i32
    %c0_i32_1 = arith.constant 0 : i32
    return %arg0, %c0_i32, %c0_i32_0 : i32, i32, i32
  }
  func.func @transform_1(%arg0: i32) -> (i32, i32) {
    %c0_i32 = arith.constant 0 : i32
    %c0_i32_0 = arith.constant 0 : i32
    %c0_i32_1 = arith.constant 0 : i32
    return %c0_i32, %c0_i32_0 : i32, i32
  }
  func.func @transform_2(%arg0: i32) -> (i32, i32) {
    %c0_i32 = arith.constant 0 : i32
    %c0_i32_0 = arith.constant 0 : i32
    %c0_i32_1 = arith.constant 0 : i32
    return %c0_i32, %c0_i32_0 : i32, i32
  }
  func.func @transform_3(%arg0: i32) -> (i32, i32) {
    %c0_i32 = arith.constant 0 : i32
    %c0_i32_0 = arith.constant 0 : i32
    %c0_i32_1 = arith.constant 0 : i32
    return %c0_i32, %c0_i32_0 : i32, i32
  }
  func.func @transform_4(%arg0: i32) -> (i32, i32, i32) {
    %c0_i32 = arith.constant 0 : i32
    %c0_i32_0 = arith.constant 0 : i32
    %c0_i32_1 = arith.constant 0 : i32
    return %arg0, %c0_i32, %c0_i32_0 : i32, i32, i32
  }
}

</mosaic_0001>

<llo_original>
// kernel: custom_res_forward.1
$region0: #{custom_res_forward.1}
  #allocation0 [shape = 'u32[]', space=smem, size = 0x4, offset = 0x4, fixed_abs, tag = 'smem constant byte address 0x4 - core index']
  #allocation1 [shape = 'u32[144,128]{1,0:T(1,128)}', space=vmem, size = 0x12000, scoped, tag = 'internal scratch']
  #allocation2 [shape = 'f32[8,128]{1,0:T(8,128)}', space=vmem, size = 0x1000, scoped, tag = 'scratch operand']
  %s0 = inlined_call_operand.vmem [shape: f32[8,8,1], index: 0, kind: input, shape index: {}]
  %s1 = inlined_call_operand.vmem [shape: f32[1,128], index: 1, kind: input, shape index: {}]
  %s2 = inlined_call_operand.vmem [shape: f32[1,128], index: 2, kind: input, shape index: {}]
  %s3 = inlined_call_operand.vmem [shape: f32[128,128], index: 3, kind: input, shape index: {}]
  %s4 = inlined_call_operand.vmem [shape: f32[8,8,128], index: 4, kind: output, shape index: {}]
  %s5 = sld [smem:[#allocation0]]
  $region30: #{custom_res_forward.1} parent=0
    _
  %s7 = ssub.s32 1, %s5
  %s8 = scalar_select 0, %s7, %s5
  // Predicated region
  $region2: #{custom_res_forward.1} parent=0 // pred_check
    _
  $region3: #{custom_res_forward.1} parent=0 // pred_check_branch
    %10 = sbr.rel (0) target = $region5
  $region4: #{custom_res_forward.1} parent=0 // pred_region
    _
  $region5: #{custom_res_forward.1} parent=0 // pred_fallthru
    _
  // Predicated region
  $region6: #{custom_res_forward.1} parent=0 // pred_check
    _
  $region7: #{custom_res_forward.1} parent=0 // pred_check_branch
    %12 = sbr.rel (0) target = $region9
  $region8: #{custom_res_forward.1} parent=0 // pred_region
    _
  $region9: #{custom_res_forward.1} parent=0 // pred_fallthru
    _
  // Predicated region
  $region10: #{custom_res_forward.1} parent=0 // pred_check
    _
  $region11: #{custom_res_forward.1} parent=0 // pred_check_branch
    %14 = sbr.rel (0) target = $region13
  $region12: #{custom_res_forward.1} parent=0 // pred_region
    _
  $region13: #{custom_res_forward.1} parent=0 // pred_fallthru
    _
  // Predicated region
  $region14: #{custom_res_forward.1} parent=0 // pred_check
    _
  $region15: #{custom_res_forward.1} parent=0 // pred_check_branch
    %16 = sbr.rel (0) target = $region17
  $region16: #{custom_res_forward.1} parent=0 // pred_region
    _
  $region17: #{custom_res_forward.1} parent=0 // pred_fallthru
    _
  %p17 = scmp.eq.s32.totalorder 0, 0
  // Predicated region
  $region18: #{custom_res_forward.1} parent=0 // pred_check
    %p18 = pneg %p17
  $region19: #{custom_res_forward.1} parent=0 // pred_check_branch
    %20 = sbr.rel (%p18) target = $region21
  $region20: #{custom_res_forward.1} parent=0 // pred_region
    %21 = vst [vmem:[#allocation2] sm:$0xff] 0.0
  $region21: #{custom_res_forward.1} parent=0 // pred_fallthru
    _
  %v22 = vld [vmem:[%s3] sm:$0xff]
  %v23 = vld [vmem:[%s3 + $0x8] sm:$0xff]
  %v24 = vld [vmem:[%s3 + $0x10] sm:$0xff]
  %v25 = vld [vmem:[%s3 + $0x18] sm:$0xff]
  %v26 = vld [vmem:[%s3 + $0x20] sm:$0xff]
  %v27 = vld [vmem:[%s3 + $0x28] sm:$0xff]
  %v28 = vld [vmem:[%s3 + $0x30] sm:$0xff]
  %v29 = vld [vmem:[%s3 + $0x38] sm:$0xff]
  %v30 = vld [vmem:[%s3 + $0x40] sm:$0xff]
  %v31 = vld [vmem:[%s3 + $0x48] sm:$0xff]
  %v32 = vld [vmem:[%s3 + $0x50] sm:$0xff]
  %v33 = vld [vmem:[%s3 + $0x58] sm:$0xff]
  %v34 = vld [vmem:[%s3 + $0x60] sm:$0xff]
  %v35 = vld [vmem:[%s3 + $0x68] sm:$0xff]
  %v36 = vld [vmem:[%s3 + $0x70] sm:$0xff]
  %v37 = vld [vmem:[%s3 + $0x78] sm:$0xff]
  %v38 = vld [vmem:[%s1] sm:$0x1]
  %v40 = vlaneseq
  %v41 = vshrl.u32 %v40, 7
  %v42 = vsub.s32 0, %v41
  %v43 = vrot.slane %v38, %v42
  %v45 = vld [vmem:[%s2] sm:$0x1]
  %v47 = vlaneseq
  %v48 = vshrl.u32 %v47, 7
  %v49 = vsub.s32 0, %v48
  %v50 = vrot.slane %v45, %v49
  %v52 = vld [vmem:[#allocation2] sm:$0xff]
  %v53 = vld [vmem:[%s0] sm:$0xff]
  %55 = vset.pattern.permute.xlu0 0
  %56 = vperm.xlu0 %55, %v53
  %v57 = vpop.permute.xlu0 %56
  %v59 = vmul.f32 %v57, %v43
  %v60 = vadd.f32 %v59, %v50
  %61 = vmatprep.subr.mxu0 0.0
  %62 = vmatpush1.msra.mxu0 %v22
  %63 = vmatprep.subr.mxu0 0.0
  %64 = vmatpush1.msra.mxu0 %v23
  %65 = vmatprep.subr.mxu0 0.0
  %66 = vmatpush1.msra.mxu0 %v24
  %67 = vmatprep.subr.mxu0 0.0
  %68 = vmatpush1.msra.mxu0 %v25
  %69 = vmatprep.subr.mxu0 0.0
  %70 = vmatpush1.msra.mxu0 %v26
  %71 = vmatprep.subr.mxu0 0.0
  %72 = vmatpush1.msra.mxu0 %v27
  %73 = vmatprep.subr.mxu0 0.0
  %74 = vmatpush1.msra.mxu0 %v28
  %75 = vmatprep.subr.mxu0 0.0
  %76 = vmatpush1.msra.mxu0 %v29
  %77 = vmatprep.subr.mxu0 0.0
  %78 = vmatpush1.msra.mxu0 %v30
  %79 = vmatprep.subr.mxu0 0.0
  %80 = vmatpush1.msra.mxu0 %v31
  %81 = vmatprep.subr.mxu0 0.0
  %82 = vmatpush1.msra.mxu0 %v32
  %83 = vmatprep.subr.mxu0 0.0
  %84 = vmatpush1.msra.mxu0 %v33
  %85 = vmatprep.subr.mxu0 0.0
  %86 = vmatpush1.msra.mxu0 %v34
  %87 = vmatprep.subr.mxu0 0.0
  %88 = vmatpush1.msra.mxu0 %v35
  %89 = vmatprep.subr.mxu0 0.0
  %90 = vmatpush1.msra.mxu0 %v36
  %91 = vmatprep.subr.mxu0 0.0
  %92 = vmatpush1.msra.mxu0 %v37
  %93 = vmatprep.subr.mxu0 0.0
  %94 = vmatpush1.msra.mxu0 0.0
  %95 = vmatprep.subr.mxu0 0.0
  %96 = vmatpush1.msra.mxu0 0.0
  %97 = vmatprep.subr.mxu0 0.0
  %98 = vmatpush1.msra.mxu0 0.0
  %99 = vmatprep.subr.mxu0 0.0
  %100 = vmatpush1.msra.mxu0 0.0
  %101 = vmatprep.subr.mxu0 0.0
  %102 = vmatpush1.msra.mxu0 0.0
  %103 = vmatprep.subr.mxu0 0.0
  %104 = vmatpush1.msra.mxu0 0.0
  %105 = vmatprep.subr.mxu0 0.0
  %106 = vmatpush1.msra.mxu0 0.0
  %107 = vmatprep.subr.mxu0 0.0
  %108 = vmatpush1.msra.mxu0 0.0
  %109 = vmatprep.subr.mxu0 0.0
  %110 = vmatpush1.msra.mxu0 0.0
  %111 = vmatprep.subr.mxu0 0.0
  %112 = vmatpush1.msra.mxu0 0.0
  %113 = vmatprep.subr.mxu0 0.0
  %114 = vmatpush1.msra.mxu0 0.0
  %115 = vmatprep.subr.mxu0 0.0
  %116 = vmatpush1.msra.mxu0 0.0
  %117 = vmatprep.subr.mxu0 0.0
  %118 = vmatpush1.msra.mxu0 0.0
  %119 = vmatprep.subr.mxu0 0.0
  %120 = vmatpush1.msra.mxu0 0.0
  %121 = vmatprep.subr.mxu0 0.0
  %122 = vmatpush1.msra.mxu0 0.0
  %123 = vmatprep.subr.mxu0 0.0
  %124 = vmatpush1.msra.mxu0 0.0
  %125 = vmatprep.mubr.f32.mxu0 0.0
  %126 = vmatmul.mubr.f32.gmra.mrb[0].mxu0 %v52
  %v127 = vpop.f32.mrb[0].mxu0
  %v128 = vadd.f32 %v60, %v127
  %v129 = vpop.f32.mrb[0].mxu0
  %130 = vdwg.mxu0
  %131 = vst [vmem:[%s4] sm:$0xff] %v128
  %v132 = vadd.f32 %v52, %v128
  %s133 = scalar_lea.vmem %s0, 8
  %v134 = vld [vmem:[%s133] sm:$0xff]
  %136 = vset.pattern.permute.xlu0 0
  %137 = vperm.xlu0 %136, %v134
  %v138 = vpop.permute.xlu0 %137
  %v140 = vmul.f32 %v138, %v43
  %v141 = vadd.f32 %v140, %v50
  %142 = vmatprep.subr.mxu0 0.0
  %143 = vmatpush1.msra.mxu0 %v22
  %144 = vmatprep.subr.mxu0 0.0
  %145 = vmatpush1.msra.mxu0 %v23
  %146 = vmatprep.subr.mxu0 0.0
  %147 = vmatpush1.msra.mxu0 %v24
  %148 = vmatprep.subr.mxu0 0.0
  %149 = vmatpush1.msra.mxu0 %v25
  %150 = vmatprep.subr.mxu0 0.0
  %151 = vmatpush1.msra.mxu0 %v26
  %152 = vmatprep.subr.mxu0 0.0
  %153 = vmatpush1.msra.mxu0 %v27
  %154 = vmatprep.subr.mxu0 0.0
  %155 = vmatpush1.msra.mxu0 %v28
  %156 = vmatprep.subr.mxu0 0.0
  %157 = vmatpush1.msra.mxu0 %v29
  %158 = vmatprep.subr.mxu0 0.0
  %159 = vmatpush1.msra.mxu0 %v30
  %160 = vmatprep.subr.mxu0 0.0
  %161 = vmatpush1.msra.mxu0 %v31
  %162 = vmatprep.subr.mxu0 0.0
  %163 = vmatpush1.msra.mxu0 %v32
  %164 = vmatprep.subr.mxu0 0.0
  %165 = vmatpush1.msra.mxu0 %v33
  %166 = vmatprep.subr.mxu0 0.0
  %167 = vmatpush1.msra.mxu0 %v34
  %168 = vmatprep.subr.mxu0 0.0
  %169 = vmatpush1.msra.mxu0 %v35
  %170 = vmatprep.subr.mxu0 0.0
  %171 = vmatpush1.msra.mxu0 %v36
  %172 = vmatprep.subr.mxu0 0.0
  %173 = vmatpush1.msra.mxu0 %v37
  %174 = vmatprep.subr.mxu0 0.0
  %175 = vmatpush1.msra.mxu0 0.0
  %176 = vmatprep.subr.mxu0 0.0
  %177 = vmatpush1.msra.mxu0 0.0
  %178 = vmatprep.subr.mxu0 0.0
  %179 = vmatpush1.msra.mxu0 0.0
  %180 = vmatprep.subr.mxu0 0.0
  %181 = vmatpush1.msra.mxu0 0.0
  %182 = vmatprep.subr.mxu0 0.0
  %183 = vmatpush1.msra.mxu0 0.0
  %184 = vmatprep.subr.mxu0 0.0
  %185 = vmatpush1.msra.mxu0 0.0
  %186 = vmatprep.subr.mxu0 0.0
  %187 = vmatpush1.msra.mxu0 0.0
  %188 = vmatprep.subr.mxu0 0.0
  %189 = vmatpush1.msra.mxu0 0.0
  %190 = vmatprep.subr.mxu0 0.0
  %191 = vmatpush1.msra.mxu0 0.0
  %192 = vmatprep.subr.mxu0 0.0
  %193 = vmatpush1.msra.mxu0 0.0
  %194 = vmatprep.subr.mxu0 0.0
  %195 = vmatpush1.msra.mxu0 0.0
  %196 = vmatprep.subr.mxu0 0.0
  %197 = vmatpush1.msra.mxu0 0.0
  %198 = vmatprep.subr.mxu0 0.0
  %199 = vmatpush1.msra.mxu0 0.0
  %200 = vmatprep.subr.mxu0 0.0
  %201 = vmatpush1.msra.mxu0 0.0
  %202 = vmatprep.subr.mxu0 0.0
  %203 = vmatpush1.msra.mxu0 0.0
  %204 = vmatprep.subr.mxu0 0.0
  %205 = vmatpush1.msra.mxu0 0.0
  %206 = vmatprep.mubr.f32.mxu0 0.0
  %207 = vmatmul.mubr.f32.gmra.mrb[0].mxu0 %v132
  %v208 = vpop.f32.mrb[0].mxu0
  %v209 = vadd.f32 %v141, %v208
  %v210 = vpop.f32.mrb[0].mxu0
  %211 = vdwg.mxu0
  %s212 = scalar_lea.vmem %s4, 8
  %213 = vst [vmem:[%s212] sm:$0xff] %v209
  %v214 = vadd.f32 %v132, %v209
  %s215 = scalar_lea.vmem %s0, 16
  %v216 = vld [vmem:[%s215] sm:$0xff]
  %218 = vset.pattern.permute.xlu0 0
  %219 = vperm.xlu0 %218, %v216
  %v220 = vpop.permute.xlu0 %219
  %v222 = vmul.f32 %v220, %v43
  %v223 = vadd.f32 %v222, %v50
  %224 = vmatprep.subr.mxu0 0.0
  %225 = vmatpush1.msra.mxu0 %v22
  %226 = vmatprep.subr.mxu0 0.0
  %227 = vmatpush1.msra.mxu0 %v23
  %228 = vmatprep.subr.mxu0 0.0
  %229 = vmatpush1.msra.mxu0 %v24
  %230 = vmatprep.subr.mxu0 0.0
  %231 = vmatpush1.msra.mxu0 %v25
  %232 = vmatprep.subr.mxu0 0.0
  %233 = vmatpush1.msra.mxu0 %v26
  %234 = vmatprep.subr.mxu0 0.0
  %235 = vmatpush1.msra.mxu0 %v27
  %236 = vmatprep.subr.mxu0 0.0
  %237 = vmatpush1.msra.mxu0 %v28
  %238 = vmatprep.subr.mxu0 0.0
  %239 = vmatpush1.msra.mxu0 %v29
  %240 = vmatprep.subr.mxu0 0.0
  %241 = vmatpush1.msra.mxu0 %v30
  %242 = vmatprep.subr.mxu0 0.0
  %243 = vmatpush1.msra.mxu0 %v31
  %244 = vmatprep.subr.mxu0 0.0
  %245 = vmatpush1.msra.mxu0 %v32
  %246 = vmatprep.subr.mxu0 0.0
  %247 = vmatpush1.msra.mxu0 %v33
  %248 = vmatprep.subr.mxu0 0.0
  %249 = vmatpush1.msra.mxu0 %v34
  %250 = vmatprep.subr.mxu0 0.0
  %251 = vmatpush1.msra.mxu0 %v35
  %252 = vmatprep.subr.mxu0 0.0
  %253 = vmatpush1.msra.mxu0 %v36
  %254 = vmatprep.subr.mxu0 0.0
  %255 = vmatpush1.msra.mxu0 %v37
  %256 = vmatprep.subr.mxu0 0.0
  %257 = vmatpush1.msra.mxu0 0.0
  %258 = vmatprep.subr.mxu0 0.0
  %259 = vmatpush1.msra.mxu0 0.0
  %260 = vmatprep.subr.mxu0 0.0
  %261 = vmatpush1.msra.mxu0 0.0
  %262 = vmatprep.subr.mxu0 0.0
  %263 = vmatpush1.msra.mxu0 0.0
  %264 = vmatprep.subr.mxu0 0.0
  %265 = vmatpush1.msra.mxu0 0.0
  %266 = vmatprep.subr.mxu0 0.0
  %267 = vmatpush1.msra.mxu0 0.0
  %268 = vmatprep.subr.mxu0 0.0
  %269 = vmatpush1.msra.mxu0 0.0
  %270 = vmatprep.subr.mxu0 0.0
  %271 = vmatpush1.msra.mxu0 0.0
  %272 = vmatprep.subr.mxu0 0.0
  %273 = vmatpush1.msra.mxu0 0.0
  %274 = vmatprep.subr.mxu0 0.0
  %275 = vmatpush1.msra.mxu0 0.0
  %276 = vmatprep.subr.mxu0 0.0
  %277 = vmatpush1.msra.mxu0 0.0
  %278 = vmatprep.subr.mxu0 0.0
  %279 = vmatpush1.msra.mxu0 0.0
  %280 = vmatprep.subr.mxu0 0.0
  %281 = vmatpush1.msra.mxu0 0.0
  %282 = vmatprep.subr.mxu0 0.0
  %283 = vmatpush1.msra.mxu0 0.0
  %284 = vmatprep.subr.mxu0 0.0
  %285 = vmatpush1.msra.mxu0 0.0
  %286 = vmatprep.subr.mxu0 0.0
  %287 = vmatpush1.msra.mxu0 0.0
  %288 = vmatprep.mubr.f32.mxu0 0.0
  %289 = vmatmul.mubr.f32.gmra.mrb[0].mxu0 %v214
  %v290 = vpop.f32.mrb[0].mxu0
  %v291 = vadd.f32 %v223, %v290
  %v292 = vpop.f32.mrb[0].mxu0
  %293 = vdwg.mxu0
  %s294 = scalar_lea.vmem %s4, 16
  %295 = vst [vmem:[%s294] sm:$0xff] %v291
  %v296 = vadd.f32 %v214, %v291
  %s297 = scalar_lea.vmem %s0, 24
  %v298 = vld [vmem:[%s297] sm:$0xff]
  %300 = vset.pattern.permute.xlu0 0
  %301 = vperm.xlu0 %300, %v298
  %v302 = vpop.permute.xlu0 %301
  %v304 = vmul.f32 %v302, %v43
  %v305 = vadd.f32 %v304, %v50
  %306 = vmatprep.subr.mxu0 0.0
  %307 = vmatpush1.msra.mxu0 %v22
  %308 = vmatprep.subr.mxu0 0.0
  %309 = vmatpush1.msra.mxu0 %v23
  %310 = vmatprep.subr.mxu0 0.0
  %311 = vmatpush1.msra.mxu0 %v24
  %312 = vmatprep.subr.mxu0 0.0
  %313 = vmatpush1.msra.mxu0 %v25
  %314 = vmatprep.subr.mxu0 0.0
  %315 = vmatpush1.msra.mxu0 %v26
  %316 = vmatprep.subr.mxu0 0.0
  %317 = vmatpush1.msra.mxu0 %v27
  %318 = vmatprep.subr.mxu0 0.0
  %319 = vmatpush1.msra.mxu0 %v28
  %320 = vmatprep.subr.mxu0 0.0
  %321 = vmatpush1.msra.mxu0 %v29
  %322 = vmatprep.subr.mxu0 0.0
  %323 = vmatpush1.msra.mxu0 %v30
  %324 = vmatprep.subr.mxu0 0.0
  %325 = vmatpush1.msra.mxu0 %v31
  %326 = vmatprep.subr.mxu0 0.0
  %327 = vmatpush1.msra.mxu0 %v32
  %328 = vmatprep.subr.mxu0 0.0
  %329 = vmatpush1.msra.mxu0 %v33
  %330 = vmatprep.subr.mxu0 0.0
  %331 = vmatpush1.msra.mxu0 %v34
  %332 = vmatprep.subr.mxu0 0.0
  %333 = vmatpush1.msra.mxu0 %v35
  %334 = vmatprep.subr.mxu0 0.0
  %335 = vmatpush1.msra.mxu0 %v36
  %336 = vmatprep.subr.mxu0 0.0
  %337 = vmatpush1.msra.mxu0 %v37
  %338 = vmatprep.subr.mxu0 0.0
  %339 = vmatpush1.msra.mxu0 0.0
  %340 = vmatprep.subr.mxu0 0.0
  %341 = vmatpush1.msra.mxu0 0.0
  %342 = vmatprep.subr.mxu0 0.0
  %343 = vmatpush1.msra.mxu0 0.0
  %344 = vmatprep.subr.mxu0 0.0
  %345 = vmatpush1.msra.mxu0 0.0
  %346 = vmatprep.subr.mxu0 0.0
  %347 = vmatpush1.msra.mxu0 0.0
  %348 = vmatprep.subr.mxu0 0.0
  %349 = vmatpush1.msra.mxu0 0.0
  %350 = vmatprep.subr.mxu0 0.0
  %351 = vmatpush1.msra.mxu0 0.0
  %352 = vmatprep.subr.mxu0 0.0
  %353 = vmatpush1.msra.mxu0 0.0
  %354 = vmatprep.subr.mxu0 0.0
  %355 = vmatpush1.msra.mxu0 0.0
  %356 = vmatprep.subr.mxu0 0.0
  %357 = vmatpush1.msra.mxu0 0.0
  %358 = vmatprep.subr.mxu0 0.0
  %359 = vmatpush1.msra.mxu0 0.0
  %360 = vmatprep.subr.mxu0 0.0
  %361 = vmatpush1.msra.mxu0 0.0
  %362 = vmatprep.subr.mxu0 0.0
  %363 = vmatpush1.msra.mxu0 0.0
  %364 = vmatprep.subr.mxu0 0.0
  %365 = vmatpush1.msra.mxu0 0.0
  %366 = vmatprep.subr.mxu0 0.0
  %367 = vmatpush1.msra.mxu0 0.0
  %368 = vmatprep.subr.mxu0 0.0
  %369 = vmatpush1.msra.mxu0 0.0
  %370 = vmatprep.mubr.f32.mxu0 0.0
  %371 = vmatmul.mubr.f32.gmra.mrb[0].mxu0 %v296
  %v372 = vpop.f32.mrb[0].mxu0
  %v373 = vadd.f32 %v305, %v372
  %v374 = vpop.f32.mrb[0].mxu0
  %375 = vdwg.mxu0
  %s376 = scalar_lea.vmem %s4, 24
  %377 = vst [vmem:[%s376] sm:$0xff] %v373
  %v378 = vadd.f32 %v296, %v373
  %s379 = scalar_lea.vmem %s0, 32
  %v380 = vld [vmem:[%s379] sm:$0xff]
  %382 = vset.pattern.permute.xlu0 0
  %383 = vperm.xlu0 %382, %v380
  %v384 = vpop.permute.xlu0 %383
  %v386 = vmul.f32 %v384, %v43
  %v387 = vadd.f32 %v386, %v50
  %388 = vmatprep.subr.mxu0 0.0
  %389 = vmatpush1.msra.mxu0 %v22
  %390 = vmatprep.subr.mxu0 0.0
  %391 = vmatpush1.msra.mxu0 %v23
  %392 = vmatprep.subr.mxu0 0.0
  %393 = vmatpush1.msra.mxu0 %v24
  %394 = vmatprep.subr.mxu0 0.0
  %395 = vmatpush1.msra.mxu0 %v25
  %396 = vmatprep.subr.mxu0 0.0
  %397 = vmatpush1.msra.mxu0 %v26
  %398 = vmatprep.subr.mxu0 0.0
  %399 = vmatpush1.msra.mxu0 %v27
  %400 = vmatprep.subr.mxu0 0.0
  %401 = vmatpush1.msra.mxu0 %v28
  %402 = vmatprep.subr.mxu0 0.0
  %403 = vmatpush1.msra.mxu0 %v29
  %404 = vmatprep.subr.mxu0 0.0
  %405 = vmatpush1.msra.mxu0 %v30
  %406 = vmatprep.subr.mxu0 0.0
  %407 = vmatpush1.msra.mxu0 %v31
  %408 = vmatprep.subr.mxu0 0.0
  %409 = vmatpush1.msra.mxu0 %v32
  %410 = vmatprep.subr.mxu0 0.0
  %411 = vmatpush1.msra.mxu0 %v33
  %412 = vmatprep.subr.mxu0 0.0
  %413 = vmatpush1.msra.mxu0 %v34
  %414 = vmatprep.subr.mxu0 0.0
  %415 = vmatpush1.msra.mxu0 %v35
  %416 = vmatprep.subr.mxu0 0.0
  %417 = vmatpush1.msra.mxu0 %v36
  %418 = vmatprep.subr.mxu0 0.0
  %419 = vmatpush1.msra.mxu0 %v37
  %420 = vmatprep.subr.mxu0 0.0
  %421 = vmatpush1.msra.mxu0 0.0
  %422 = vmatprep.subr.mxu0 0.0
  %423 = vmatpush1.msra.mxu0 0.0
  %424 = vmatprep.subr.mxu0 0.0
  %425 = vmatpush1.msra.mxu0 0.0
  %426 = vmatprep.subr.mxu0 0.0
  %427 = vmatpush1.msra.mxu0 0.0
  %428 = vmatprep.subr.mxu0 0.0
  %429 = vmatpush1.msra.mxu0 0.0
  %430 = vmatprep.subr.mxu0 0.0
  %431 = vmatpush1.msra.mxu0 0.0
  %432 = vmatprep.subr.mxu0 0.0
  %433 = vmatpush1.msra.mxu0 0.0
  %434 = vmatprep.subr.mxu0 0.0
  %435 = vmatpush1.msra.mxu0 0.0
  %436 = vmatprep.subr.mxu0 0.0
  %437 = vmatpush1.msra.mxu0 0.0
  %438 = vmatprep.subr.mxu0 0.0
  %439 = vmatpush1.msra.mxu0 0.0
  %440 = vmatprep.subr.mxu0 0.0
  %441 = vmatpush1.msra.mxu0 0.0
  %442 = vmatprep.subr.mxu0 0.0
  %443 = vmatpush1.msra.mxu0 0.0
  %444 = vmatprep.subr.mxu0 0.0
  %445 = vmatpush1.msra.mxu0 0.0
  %446 = vmatprep.subr.mxu0 0.0
  %447 = vmatpush1.msra.mxu0 0.0
  %448 = vmatprep.subr.mxu0 0.0
  %449 = vmatpush1.msra.mxu0 0.0
  %450 = vmatprep.subr.mxu0 0.0
  %451 = vmatpush1.msra.mxu0 0.0
  %452 = vmatprep.mubr.f32.mxu0 0.0
  %453 = vmatmul.mubr.f32.gmra.mrb[0].mxu0 %v378
  %v454 = vpop.f32.mrb[0].mxu0
  %v455 = vadd.f32 %v387, %v454
  %v456 = vpop.f32.mrb[0].mxu0
  %457 = vdwg.mxu0
  %s458 = scalar_lea.vmem %s4, 32
  %459 = vst [vmem:[%s458] sm:$0xff] %v455
  %v460 = vadd.f32 %v378, %v455
  %s461 = scalar_lea.vmem %s0, 40
  %v462 = vld [vmem:[%s461] sm:$0xff]
  %464 = vset.pattern.permute.xlu0 0
  %465 = vperm.xlu0 %464, %v462
  %v466 = vpop.permute.xlu0 %465
  %v468 = vmul.f32 %v466, %v43
  %v469 = vadd.f32 %v468, %v50
  %470 = vmatprep.subr.mxu0 0.0
  %471 = vmatpush1.msra.mxu0 %v22
  %472 = vmatprep.subr.mxu0 0.0
  %473 = vmatpush1.msra.mxu0 %v23
  %474 = vmatprep.subr.mxu0 0.0
  %475 = vmatpush1.msra.mxu0 %v24
  %476 = vmatprep.subr.mxu0 0.0
  %477 = vmatpush1.msra.mxu0 %v25
  %478 = vmatprep.subr.mxu0 0.0
  %479 = vmatpush1.msra.mxu0 %v26
  %480 = vmatprep.subr.mxu0 0.0
  %481 = vmatpush1.msra.mxu0 %v27
  %482 = vmatprep.subr.mxu0 0.0
  %483 = vmatpush1.msra.mxu0 %v28
  %484 = vmatprep.subr.mxu0 0.0
  %485 = vmatpush1.msra.mxu0 %v29
  %486 = vmatprep.subr.mxu0 0.0
  %487 = vmatpush1.msra.mxu0 %v30
  %488 = vmatprep.subr.mxu0 0.0
  %489 = vmatpush1.msra.mxu0 %v31
  %490 = vmatprep.subr.mxu0 0.0
  %491 = vmatpush1.msra.mxu0 %v32
  %492 = vmatprep.subr.mxu0 0.0
  %493 = vmatpush1.msra.mxu0 %v33
  %494 = vmatprep.subr.mxu0 0.0
  %495 = vmatpush1.msra.mxu0 %v34
  %496 = vmatprep.subr.mxu0 0.0
  %497 = vmatpush1.msra.mxu0 %v35
  %498 = vmatprep.subr.mxu0 0.0
  %499 = vmatpush1.msra.mxu0 %v36
  %500 = vmatprep.subr.mxu0 0.0
  %501 = vmatpush1.msra.mxu0 %v37
  %502 = vmatprep.subr.mxu0 0.0
  %503 = vmatpush1.msra.mxu0 0.0
  %504 = vmatprep.subr.mxu0 0.0
  %505 = vmatpush1.msra.mxu0 0.0
  %506 = vmatprep.subr.mxu0 0.0
  %507 = vmatpush1.msra.mxu0 0.0
  %508 = vmatprep.subr.mxu0 0.0
  %509 = vmatpush1.msra.mxu0 0.0
  %510 = vmatprep.subr.mxu0 0.0
  %511 = vmatpush1.msra.mxu0 0.0
  %512 = vmatprep.subr.mxu0 0.0
  %513 = vmatpush1.msra.mxu0 0.0
  %514 = vmatprep.subr.mxu0 0.0
  %515 = vmatpush1.msra.mxu0 0.0
  %516 = vmatprep.subr.mxu0 0.0
  %517 = vmatpush1.msra.mxu0 0.0
  %518 = vmatprep.subr.mxu0 0.0
  %519 = vmatpush1.msra.mxu0 0.0
  %520 = vmatprep.subr.mxu0 0.0
  %521 = vmatpush1.msra.mxu0 0.0
  %522 = vmatprep.subr.mxu0 0.0
  %523 = vmatpush1.msra.mxu0 0.0
  %524 = vmatprep.subr.mxu0 0.0
  %525 = vmatpush1.msra.mxu0 0.0
  %526 = vmatprep.subr.mxu0 0.0
  %527 = vmatpush1.msra.mxu0 0.0
  %528 = vmatprep.subr.mxu0 0.0
  %529 = vmatpush1.msra.mxu0 0.0
  %530 = vmatprep.subr.mxu0 0.0
  %531 = vmatpush1.msra.mxu0 0.0
  %532 = vmatprep.subr.mxu0 0.0
  %533 = vmatpush1.msra.mxu0 0.0
  %534 = vmatprep.mubr.f32.mxu0 0.0
  %535 = vmatmul.mubr.f32.gmra.mrb[0].mxu0 %v460
  %v536 = vpop.f32.mrb[0].mxu0
  %v537 = vadd.f32 %v469, %v536
  %v538 = vpop.f32.mrb[0].mxu0
  %539 = vdwg.mxu0
  %s540 = scalar_lea.vmem %s4, 40
  %541 = vst [vmem:[%s540] sm:$0xff] %v537
  %v542 = vadd.f32 %v460, %v537
  %s543 = scalar_lea.vmem %s0, 48
  %v544 = vld [vmem:[%s543] sm:$0xff]
  %546 = vset.pattern.permute.xlu0 0
  %547 = vperm.xlu0 %546, %v544
  %v548 = vpop.permute.xlu0 %547
  %v550 = vmul.f32 %v548, %v43
  %v551 = vadd.f32 %v550, %v50
  %552 = vmatprep.subr.mxu0 0.0
  %553 = vmatpush1.msra.mxu0 %v22
  %554 = vmatprep.subr.mxu0 0.0
  %555 = vmatpush1.msra.mxu0 %v23
  %556 = vmatprep.subr.mxu0 0.0
  %557 = vmatpush1.msra.mxu0 %v24
  %558 = vmatprep.subr.mxu0 0.0
  %559 = vmatpush1.msra.mxu0 %v25
  %560 = vmatprep.subr.mxu0 0.0
  %561 = vmatpush1.msra.mxu0 %v26
  %562 = vmatprep.subr.mxu0 0.0
  %563 = vmatpush1.msra.mxu0 %v27
  %564 = vmatprep.subr.mxu0 0.0
  %565 = vmatpush1.msra.mxu0 %v28
  %566 = vmatprep.subr.mxu0 0.0
  %567 = vmatpush1.msra.mxu0 %v29
  %568 = vmatprep.subr.mxu0 0.0
  %569 = vmatpush1.msra.mxu0 %v30
  %570 = vmatprep.subr.mxu0 0.0
  %571 = vmatpush1.msra.mxu0 %v31
  %572 = vmatprep.subr.mxu0 0.0
  %573 = vmatpush1.msra.mxu0 %v32
  %574 = vmatprep.subr.mxu0 0.0
  %575 = vmatpush1.msra.mxu0 %v33
  %576 = vmatprep.subr.mxu0 0.0
  %577 = vmatpush1.msra.mxu0 %v34
  %578 = vmatprep.subr.mxu0 0.0
  %579 = vmatpush1.msra.mxu0 %v35
  %580 = vmatprep.subr.mxu0 0.0
  %581 = vmatpush1.msra.mxu0 %v36
  %582 = vmatprep.subr.mxu0 0.0
  %583 = vmatpush1.msra.mxu0 %v37
  %584 = vmatprep.subr.mxu0 0.0
  %585 = vmatpush1.msra.mxu0 0.0
  %586 = vmatprep.subr.mxu0 0.0
  %587 = vmatpush1.msra.mxu0 0.0
  %588 = vmatprep.subr.mxu0 0.0
  %589 = vmatpush1.msra.mxu0 0.0
  %590 = vmatprep.subr.mxu0 0.0
  %591 = vmatpush1.msra.mxu0 0.0
  %592 = vmatprep.subr.mxu0 0.0
  %593 = vmatpush1.msra.mxu0 0.0
  %594 = vmatprep.subr.mxu0 0.0
  %595 = vmatpush1.msra.mxu0 0.0
  %596 = vmatprep.subr.mxu0 0.0
  %597 = vmatpush1.msra.mxu0 0.0
  %598 = vmatprep.subr.mxu0 0.0
  %599 = vmatpush1.msra.mxu0 0.0
  %600 = vmatprep.subr.mxu0 0.0
  %601 = vmatpush1.msra.mxu0 0.0
  %602 = vmatprep.subr.mxu0 0.0
  %603 = vmatpush1.msra.mxu0 0.0
  %604 = vmatprep.subr.mxu0 0.0
  %605 = vmatpush1.msra.mxu0 0.0
  %606 = vmatprep.subr.mxu0 0.0
  %607 = vmatpush1.msra.mxu0 0.0
  %608 = vmatprep.subr.mxu0 0.0
  %609 = vmatpush1.msra.mxu0 0.0
  %610 = vmatprep.subr.mxu0 0.0
  %611 = vmatpush1.msra.mxu0 0.0
  %612 = vmatprep.subr.mxu0 0.0
  %613 = vmatpush1.msra.mxu0 0.0
  %614 = vmatprep.subr.mxu0 0.0
  %615 = vmatpush1.msra.mxu0 0.0
  %616 = vmatprep.mubr.f32.mxu0 0.0
  %617 = vmatmul.mubr.f32.gmra.mrb[0].mxu0 %v542
  %v618 = vpop.f32.mrb[0].mxu0
  %v619 = vadd.f32 %v551, %v618
  %v620 = vpop.f32.mrb[0].mxu0
  %621 = vdwg.mxu0
  %s622 = scalar_lea.vmem %s4, 48
  %623 = vst [vmem:[%s622] sm:$0xff] %v619
  %v624 = vadd.f32 %v542, %v619
  %s625 = scalar_lea.vmem %s0, 56
  %v626 = vld [vmem:[%s625] sm:$0xff]
  %628 = vset.pattern.permute.xlu0 0
  %629 = vperm.xlu0 %628, %v626
  %v630 = vpop.permute.xlu0 %629
  %v632 = vmul.f32 %v630, %v43
  %v633 = vadd.f32 %v632, %v50
  %634 = vmatprep.subr.mxu0 0.0
  %635 = vmatpush1.msra.mxu0 %v22
  %636 = vmatprep.subr.mxu0 0.0
  %637 = vmatpush1.msra.mxu0 %v23
  %638 = vmatprep.subr.mxu0 0.0
  %639 = vmatpush1.msra.mxu0 %v24
  %640 = vmatprep.subr.mxu0 0.0
  %641 = vmatpush1.msra.mxu0 %v25
  %642 = vmatprep.subr.mxu0 0.0
  %643 = vmatpush1.msra.mxu0 %v26
  %644 = vmatprep.subr.mxu0 0.0
  %645 = vmatpush1.msra.mxu0 %v27
  %646 = vmatprep.subr.mxu0 0.0
  %647 = vmatpush1.msra.mxu0 %v28
  %648 = vmatprep.subr.mxu0 0.0
  %649 = vmatpush1.msra.mxu0 %v29
  %650 = vmatprep.subr.mxu0 0.0
  %651 = vmatpush1.msra.mxu0 %v30
  %652 = vmatprep.subr.mxu0 0.0
  %653 = vmatpush1.msra.mxu0 %v31
  %654 = vmatprep.subr.mxu0 0.0
  %655 = vmatpush1.msra.mxu0 %v32
  %656 = vmatprep.subr.mxu0 0.0
  %657 = vmatpush1.msra.mxu0 %v33
  %658 = vmatprep.subr.mxu0 0.0
  %659 = vmatpush1.msra.mxu0 %v34
  %660 = vmatprep.subr.mxu0 0.0
  %661 = vmatpush1.msra.mxu0 %v35
  %662 = vmatprep.subr.mxu0 0.0
  %663 = vmatpush1.msra.mxu0 %v36
  %664 = vmatprep.subr.mxu0 0.0
  %665 = vmatpush1.msra.mxu0 %v37
  %666 = vmatprep.subr.mxu0 0.0
  %667 = vmatpush1.msra.mxu0 0.0
  %668 = vmatprep.subr.mxu0 0.0
  %669 = vmatpush1.msra.mxu0 0.0
  %670 = vmatprep.subr.mxu0 0.0
  %671 = vmatpush1.msra.mxu0 0.0
  %672 = vmatprep.subr.mxu0 0.0
  %673 = vmatpush1.msra.mxu0 0.0
  %674 = vmatprep.subr.mxu0 0.0
  %675 = vmatpush1.msra.mxu0 0.0
  %676 = vmatprep.subr.mxu0 0.0
  %677 = vmatpush1.msra.mxu0 0.0
  %678 = vmatprep.subr.mxu0 0.0
  %679 = vmatpush1.msra.mxu0 0.0
  %680 = vmatprep.subr.mxu0 0.0
  %681 = vmatpush1.msra.mxu0 0.0
  %682 = vmatprep.subr.mxu0 0.0
  %683 = vmatpush1.msra.mxu0 0.0
  %684 = vmatprep.subr.mxu0 0.0
  %685 = vmatpush1.msra.mxu0 0.0
  %686 = vmatprep.subr.mxu0 0.0
  %687 = vmatpush1.msra.mxu0 0.0
  %688 = vmatprep.subr.mxu0 0.0
  %689 = vmatpush1.msra.mxu0 0.0
  %690 = vmatprep.subr.mxu0 0.0
  %691 = vmatpush1.msra.mxu0 0.0
  %692 = vmatprep.subr.mxu0 0.0
  %693 = vmatpush1.msra.mxu0 0.0
  %694 = vmatprep.subr.mxu0 0.0
  %695 = vmatpush1.msra.mxu0 0.0
  %696 = vmatprep.subr.mxu0 0.0
  %697 = vmatpush1.msra.mxu0 0.0
  %698 = vmatprep.mubr.f32.mxu0 0.0
  %699 = vmatmul.mubr.f32.gmra.mrb[0].mxu0 %v624
  %v700 = vpop.f32.mrb[0].mxu0
  %v701 = vadd.f32 %v633, %v700
  %v702 = vpop.f32.mrb[0].mxu0
  %703 = vdwg.mxu0
  %s704 = scalar_lea.vmem %s4, 56
  %705 = vst [vmem:[%s704] sm:$0xff] %v701
  %v706 = vadd.f32 %v624, %v701
  %707 = vst [vmem:[#allocation2] sm:$0xff] %v706
  // Predicated region
  $region22: #{custom_res_forward.1} parent=0 // pred_check
    _
  $region23: #{custom_res_forward.1} parent=0 // pred_check_branch
    %709 = sbr.rel (0) target = $region25
  $region24: #{custom_res_forward.1} parent=0 // pred_region
    _
  $region25: #{custom_res_forward.1} parent=0 // pred_fallthru
    _
  // Predicated region
  $region26: #{custom_res_forward.1} parent=0 // pred_check
    _
  $region27: #{custom_res_forward.1} parent=0 // pred_check_branch
    %711 = sbr.rel (0) target = $region29
  $region28: #{custom_res_forward.1} parent=0 // pred_region
    _
  $region29: #{custom_res_forward.1} parent=0 // pred_fallthru
    _

</llo_original>
